<compile_context>
chip_gen: v7x
topology: tpu7x:2x2x1
jax: 0.10.0
libtpu: 0.0.40
codegen_flags: <defaults>
</compile_context>

<pallas_src>
import functools

import jax
import jax.numpy as jnp
from jax import lax
from jax.experimental import pallas as pl
from jax.experimental.pallas import tpu as pltpu

_NEG_BIG = -1.0e9   # plain Python float (literal) -- no captured jax.Array consts


def _ntxent_kernel(
    z1q_ref, z2q_ref,        # f32 row (query) tiles of each view, (tile, D)
    z1k_ref, z2k_ref,        # matmul_dtype col (key) tiles of each view, (tile, D)
    lse_ref, pos_ref,        # outputs: lane-dense (1, 2*tile) / (1, tile)
    m_ref, l_ref,            # online-logsumexp running state, (1, 2*tile) f32
    zqs_ref,                 # cached merged (1/T)-scaled query tile, (2*tile, D)
    *, inv_T: float, tile: int, matmul_dtype,
):
    i = pl.program_id(0)     # row-tile index ("parallel")
    j = pl.program_id(1)     # col-tile index ("arbitrary", innermost)
    nk = pl.num_programs(1)

    # ---- first col step for this row tile: init state, cache scaled queries --
    @pl.when(j == 0)
    def _init():
        m_ref[...] = jnp.full(m_ref.shape, -jnp.inf, dtype=jnp.float32)
        l_ref[...] = jnp.zeros(l_ref.shape, dtype=jnp.float32)
        # Fold 1/T into the query operand once per row tile: scale in f32,
        # then cast (scale-then-cast) to the MXU operand dtype.
        zqs_ref[pl.ds(0, tile), :] = (z1q_ref[...] * inv_T).astype(matmul_dtype)
        zqs_ref[pl.ds(tile, tile), :] = (z2q_ref[...] * inv_T).astype(matmul_dtype)

    zq = zqs_ref[...]        # (2*tile, D), scaled, matmul_dtype
    zk1 = z1k_ref[...]       # (tile, D), matmul_dtype (cast once in the wrapper)
    zk2 = z2k_ref[...]

    dn = (((1,), (1,)), ((), ()))
    # "Transposed" orientation: rows = keys of this col tile, cols = merged
    # queries -> per-query reductions land on the lane axis (lane-dense state).
    sA = lax.dot_general(zk1, zq, dn, preferred_element_type=jnp.float32)  # (tile, 2*tile)
    sB = lax.dot_general(zk2, zq, dn, preferred_element_type=jnp.float32)  # (tile, 2*tile)

    def _online_update(sa, sb):
        # One col step of online logsumexp for all 2*tile query rows.
        m_old = m_ref[...]
        m_new = jnp.maximum(
            m_old,
            jnp.maximum(jnp.max(sa, axis=0, keepdims=True),
                        jnp.max(sb, axis=0, keepdims=True)))
        alpha = jnp.exp(m_old - m_new)
        l_ref[...] = (l_ref[...] * alpha
                      + jnp.sum(jnp.exp(sa - m_new), axis=0, keepdims=True)
                      + jnp.sum(jnp.exp(sb - m_new), axis=0, keepdims=True))
        m_ref[...] = m_new

    # Self-similarity diagonal (and the positive-pair diagonal) only live on
    # the i == j tile; off-diagonal tiles skip all mask / iota work.
    @pl.when(i == j)
    def _diag_tile():
        r = lax.broadcasted_iota(jnp.int32, (tile, 2 * tile), 0)
        c = lax.broadcasted_iota(jnp.int32, (tile, 2 * tile), 1)
        # Positive-pair logits = diag of the (view-2 keys x view-1 queries)
        # block: already scaled by 1/T and f32-accumulated by the MXU; the
        # masked sum over the key (sublane) axis yields a lane-dense (1, tile)
        # row with zero extra transposes.
        pos_ref[...] = jnp.sum(jnp.where(r == c, sB, 0.0), axis=0,
                               keepdims=True)[:, :tile]
        # sim diagonal: view-1 query c vs view-1 key r when r == c, and
        # view-2 query c vs view-2 key r when r + tile == c.
        _online_update(jnp.where(r == c, _NEG_BIG, sA),
                       jnp.where(r + tile == c, _NEG_BIG, sB))

    @pl.when(i != j)
    def _offdiag_tile():
        _online_update(sA, sB)

    # ---- last col step: per-row logsumexp (lane-dense write) ----------------
    @pl.when(j == nk - 1)
    def _finalize():
        lse_ref[...] = m_ref[...] + jnp.log(l_ref[...])


def _vmem_capacity_bytes() -> int:
    """Best-effort per-core VMEM capacity; conservative fallback when unknown."""
    try:
        cap = int(getattr(pltpu.get_tpu_info(), "vmem_capacity_bytes", 0))
        if cap > 0:
            return cap
    except Exception:        # no TPU / interpret mode / older jax
        pass
    return 64 * 1024 * 1024  # v7x per-TensorCore VMEM (the smallest of v5e/v6e/v7x)


def _footprint_bytes(tile: int, D: int, mm_itemsize: int) -> int:
    """Rough per-grid-step VMEM footprint (double-buffered inputs + scratch)."""
    row_in = 2 * 2 * tile * D * 4               # two f32 query tiles x 2 buffers
    col_in = 2 * 2 * tile * D * mm_itemsize     # two streamed key tiles x 2 buffers
    qcache = 2 * tile * D * mm_itemsize         # merged scaled query cache
    scores = 4 * 2 * tile * tile * 4            # sA/sB + exp temporaries (f32)
    return row_in + col_in + qcache + scores


def _pick_tile(B: int, D: int, mm_itemsize: int, budget_bytes: int) -> int:
    """D / dtype / VMEM-budget aware row-tile size (multiples of 128 preferred)."""
    candidates = [t for t in (512, 256, 128) if B % t == 0]
    tile = None
    for t in candidates:                         # largest tile that fits the budget
        if _footprint_bytes(t, D, mm_itemsize) <= budget_bytes:
            tile = t
            break
    if tile is None:
        tile = candidates[-1] if candidates else B
        # TODO(synk): pad ragged batch sizes up to a multiple of 128 instead of
        # falling back to a single full-size tile.
    # v7x megacore: guarantee >= 2 tiles on the "parallel" row axis when
    # possible so both TensorCores get work (halve a single full-batch tile).
    if tile == B and (B // 2) >= 128 and (B // 2) % 128 == 0 and \
            _footprint_bytes(B // 2, D, mm_itemsize) <= budget_bytes:
        tile = B // 2
    return tile


def ntxent_loss(z1, z2, T: float = 0.06, *, tile=None, matmul_dtype=jnp.bfloat16):
    """NT-Xent loss with the same semantics as the PyTorch NTXentLoss.forward.

    matmul_dtype: dtype of the MXU operands for the similarity matmul.
      bfloat16 (default) is the native MXU fast path on v5e/v6e/v7x (f32
      operands are emulated as multiple bf16 passes); pass jnp.float32 for an
      exact mode. All softmax / logsumexp accumulation stays float32.
    """
    assert z1.shape == z2.shape and z1.ndim == 2, (z1.shape, z2.shape)
    B, D = z1.shape
    z1 = jnp.asarray(z1, jnp.float32)
    z2 = jnp.asarray(z2, jnp.float32)
    matmul_dtype = jnp.dtype(matmul_dtype)
    mm_itemsize = matmul_dtype.itemsize

    cap = _vmem_capacity_bytes()
    budget = min(cap // 3, 48 * 1024 * 1024)
    if tile is None:
        tile = _pick_tile(B, D, mm_itemsize, budget)
    assert B % tile == 0, (B, tile)
    n_tiles = B // tile
    inv_T = float(1.0 / T)

    # The streamed key (col) operands are the only data re-read once per row
    # tile; hand them to the kernel already in the MXU dtype (halves that HBM
    # traffic + the double-buffered col VMEM on the bf16 path, and removes the
    # per-step VPU casts). The query (row) copies stay f32 for the
    # scale-then-cast query cache.
    if matmul_dtype == jnp.dtype(jnp.float32):
        z1k, z2k = z1, z2
    else:
        z1k = z1.astype(matmul_dtype)
        z2k = z2.astype(matmul_dtype)

    footprint = _footprint_bytes(tile, D, mm_itemsize)
    vmem_limit = int(min(cap * 3 // 4,
                         max(32 * 1024 * 1024, footprint * 3 // 2 + (8 << 20))))

    kernel = functools.partial(
        _ntxent_kernel, inv_T=inv_T, tile=tile, matmul_dtype=matmul_dtype)

    row_spec = pl.BlockSpec((tile, D), lambda i, j: (i, 0))   # query (row) tiles
    col_spec = pl.BlockSpec((tile, D), lambda i, j: (j, 0))   # streamed key tiles
    # TODO(synk): for very small D, consider pipeline_mode=pl.Buffered(3) on
    # col_spec once a profile shows the col DMA is the exposed slot.

    lse, pos = pl.pallas_call(
        kernel,
        grid=(n_tiles, n_tiles),
        in_specs=[row_spec, row_spec, col_spec, col_spec],
        out_specs=(
            pl.BlockSpec((1, 2 * tile), lambda i, j: (0, i)),  # lane-dense lse
            pl.BlockSpec((1, tile), lambda i, j: (0, i)),      # lane-dense pos
        ),
        out_shape=(
            jax.ShapeDtypeStruct((1, 2 * B), jnp.float32),     # lse, all 2B rows
            jax.ShapeDtypeStruct((1, B), jnp.float32),         # positive logits
        ),
        scratch_shapes=[
            pltpu.VMEM((1, 2 * tile), jnp.float32),            # running max m
            pltpu.VMEM((1, 2 * tile), jnp.float32),            # running sum l
            pltpu.VMEM((2 * tile, D), matmul_dtype),           # scaled query cache
        ],
        compiler_params=pltpu.CompilerParams(
            dimension_semantics=("parallel", "arbitrary"),
            vmem_limit_bytes=vmem_limit),
    )(z1, z2, z1k, z2k)

    # loss = mean over 2B rows of (-pos_dup + lse); pos is shared by rows q and
    # q + B, so it contributes 2 * sum(pos) to the total.
    total = jnp.sum(lse) - 2.0 * jnp.sum(pos)
    return total / float(2 * B)


def _ntxent_loss_ref(z1, z2, T=0.06):
    """Pure-JAX reference mirroring the PyTorch code line by line."""
    B = z1.shape[0]
    z = jnp.concatenate([z1, z2], axis=0)
    sim = (z @ z.T) / T
    sim = jnp.where(jnp.eye(2 * B, dtype=bool), -1.0e9, sim)
    pos = jnp.sum(z1 * z2, axis=1) / T
    pos = jnp.concatenate([pos, pos], axis=0)
    return jnp.mean(-pos + jax.nn.logsumexp(sim, axis=1))


if __name__ == "__main__":
    key = jax.random.PRNGKey(0)
    k1, k2, k3, k4 = jax.random.split(key, 4)

    def _unit(x):
        return x / jnp.linalg.norm(x, axis=1, keepdims=True)

    # 1) Small single-tile case (batch=8, embed dim=32), exact f32 MXU path.
    #    Tolerances are not exact-equality because the pure-JAX reference's
    #    f32 matmul on TPU itself runs at DEFAULT (reduced) precision.
    B, D = 8, 32
    z1 = _unit(jax.random.normal(k1, (B, D), dtype=jnp.float32))
    z2 = _unit(jax.random.normal(k2, (B, D), dtype=jnp.float32))
    loss = jax.block_until_ready(
        ntxent_loss(z1, z2, T=0.06, matmul_dtype=jnp.float32))
    loss_ref = _ntxent_loss_ref(z1, z2, T=0.06)
    assert jnp.isfinite(loss), "kernel produced non-finite loss"
    assert jnp.allclose(loss, loss_ref, rtol=2e-2, atol=2e-2), (loss, loss_ref)

    # 2) Multi-tile grid: exercises the online logsumexp across col tiles, the
    #    diag + off-diag branches, and >= 2 "parallel" row tiles. f32 path.
    B2, D2 = 256, 64
    a = _unit(jax.random.normal(k3, (B2, D2), dtype=jnp.float32))
    b = _unit(jax.random.normal(k4, (B2, D2), dtype=jnp.float32))
    loss_ref2 = _ntxent_loss_ref(a, b, T=0.06)
    loss_f32 = jax.block_until_ready(
        ntxent_loss(a, b, T=0.06, matmul_dtype=jnp.float32))
    assert jnp.isfinite(loss_f32), "tiled f32 kernel produced non-finite loss"
    assert jnp.allclose(loss_f32, loss_ref2, rtol=2e-2, atol=2e-2), (loss_f32, loss_ref2)

    # 3) Default bf16-MXU fast path: logits (and the diag-extracted positive
    #    logits) shift by bf16 input rounding -> reduced-precision tolerance.
    loss_bf16 = jax.block_until_ready(ntxent_loss(a, b, T=0.06))
    assert jnp.isfinite(loss_bf16), "bf16 kernel produced non-finite loss"
    assert jnp.allclose(loss_bf16, loss_ref2, rtol=5e-2, atol=5e-2), (
        loss_bf16, loss_ref2)

    print("KERNEL_OK")
</pallas_src>

<mosaic_0001>
module attributes {stable_mosaic.version = 11 : i64} {
  func.func @_ntxent_kernel(%arg0: i32, %arg1: i32, %arg2: memref<8x32xf32, #tpu.memory_space<vmem>>, %arg3: memref<8x32xf32, #tpu.memory_space<vmem>>, %arg4: memref<8x32xf32, #tpu.memory_space<vmem>>, %arg5: memref<8x32xf32, #tpu.memory_space<vmem>>, %arg6: memref<1x16xf32, #tpu.memory_space<vmem>>, %arg7: memref<1x8xf32, #tpu.memory_space<vmem>>, %arg8: memref<1x16xf32, #tpu.memory_space<vmem>>, %arg9: memref<1x16xf32, #tpu.memory_space<vmem>>, %arg10: memref<16x32xf32, #tpu.memory_space<vmem>>) attributes {dimension_semantics = [#tpu.dimension_semantics<parallel>, #tpu.dimension_semantics<arbitrary>], iteration_bounds = array<i64: 1, 1>, scalar_prefetch = 0 : i64, scratch_operands = 3 : i64, tpu.core_type = #tpu.core_type<tc>, window_params = [{transform_indices = @transform_0, window_bounds = array<i64: 8, 32>}, {transform_indices = @transform_1, window_bounds = array<i64: 8, 32>}, {transform_indices = @transform_2, window_bounds = array<i64: 8, 32>}, {transform_indices = @transform_3, window_bounds = array<i64: 8, 32>}, {transform_indices = @transform_4, window_bounds = array<i64: 1, 16>}, {transform_indices = @transform_5, window_bounds = array<i64: 1, 8>}]} {
    %c0_i32 = arith.constant 0 : i32
    %0 = arith.cmpi eq, %arg1, %c0_i32 : i32
    %1 = arith.extui %0 : i1 to i32
    %c0_i32_0 = arith.constant 0 : i32
    %2 = arith.cmpi ne, %1, %c0_i32_0 : i32
    scf.if %2 {
      %cst_11 = arith.constant 0xFF800000 : f32
      %17 = vector.broadcast %cst_11 : f32 to vector<1x16xf32>
      %c0_12 = arith.constant 0 : index
      %c0_13 = arith.constant 0 : index
      %18 = vector.load %arg8[%c0_12, %c0_13] : memref<1x16xf32, #tpu.memory_space<vmem>>, vector<1x16xf32>
      tpu.vector_store %arg8[%c0_12, %c0_13], %17 {strides = array<i32>} : memref<1x16xf32, #tpu.memory_space<vmem>>, vector<1x16xf32>,
      %cst_14 = arith.constant 0.000000e+00 : f32
      %19 = vector.broadcast %cst_14 : f32 to vector<1x16xf32>
      %c0_15 = arith.constant 0 : index
      %c0_16 = arith.constant 0 : index
      %20 = vector.load %arg9[%c0_15, %c0_16] : memref<1x16xf32, #tpu.memory_space<vmem>>, vector<1x16xf32>
      tpu.vector_store %arg9[%c0_15, %c0_16], %19 {strides = array<i32>} : memref<1x16xf32, #tpu.memory_space<vmem>>, vector<1x16xf32>,
      %c0_17 = arith.constant 0 : index
      %c0_18 = arith.constant 0 : index
      %21 = vector.load %arg2[%c0_17, %c0_18] : memref<8x32xf32, #tpu.memory_space<vmem>>, vector<8x32xf32>
      %cst_19 = arith.constant 16.666666 : f32
      %22 = vector.broadcast %cst_19 : f32 to vector<8x32xf32>
      %23 = arith.mulf %21, %22 : vector<8x32xf32>
      %c0_20 = arith.constant 0 : index
      %c0_21 = arith.constant 0 : index
      %24 = vector.load %arg10[%c0_20, %c0_21] : memref<16x32xf32, #tpu.memory_space<vmem>>, vector<8x32xf32>
      tpu.vector_store %arg10[%c0_20, %c0_21], %23 {strides = array<i32>} : memref<16x32xf32, #tpu.memory_space<vmem>>, vector<8x32xf32>,
      %c0_22 = arith.constant 0 : index
      %c0_23 = arith.constant 0 : index
      %25 = vector.load %arg3[%c0_22, %c0_23] : memref<8x32xf32, #tpu.memory_space<vmem>>, vector<8x32xf32>
      %cst_24 = arith.constant 16.666666 : f32
      %26 = vector.broadcast %cst_24 : f32 to vector<8x32xf32>
      %27 = arith.mulf %25, %26 : vector<8x32xf32>
      %c8 = arith.constant 8 : index
      %c0_25 = arith.constant 0 : index
      %28 = vector.load %arg10[%c8, %c0_25] : memref<16x32xf32, #tpu.memory_space<vmem>>, vector<8x32xf32>
      tpu.vector_store %arg10[%c8, %c0_25], %27 {strides = array<i32>} : memref<16x32xf32, #tpu.memory_space<vmem>>, vector<8x32xf32>,
    } else {
    }
    %c0 = arith.constant 0 : index
    %c0_1 = arith.constant 0 : index
    %3 = vector.load %arg10[%c0, %c0_1] : memref<16x32xf32, #tpu.memory_space<vmem>>, vector<16x32xf32>
    %c0_2 = arith.constant 0 : index
    %c0_3 = arith.constant 0 : index
    %4 = vector.load %arg4[%c0_2, %c0_3] : memref<8x32xf32, #tpu.memory_space<vmem>>, vector<8x32xf32>
    %c0_4 = arith.constant 0 : index
    %c0_5 = arith.constant 0 : index
    %5 = vector.load %arg5[%c0_4, %c0_5] : memref<8x32xf32, #tpu.memory_space<vmem>>, vector<8x32xf32>
    %cst = arith.constant dense<0.000000e+00> : vector<8x16xf32>
    %6 = tpu.matmul %4, %3, %cst {dimension_numbers = #tpu.dot_dimension_numbers<[1], [1], [0], [0], [0, 0, 1, 0], [], []>} : vector<8x32xf32>, vector<16x32xf32>, vector<8x16xf32> -> vector<8x16xf32>
    %cst_6 = arith.constant dense<0.000000e+00> : vector<8x16xf32>
    %7 = tpu.matmul %5, %3, %cst_6 {dimension_numbers = #tpu.dot_dimension_numbers<[1], [1], [0], [0], [0, 0, 1, 0], [], []>} : vector<8x32xf32>, vector<16x32xf32>, vector<8x16xf32> -> vector<8x16xf32>
    %8 = arith.cmpi eq, %arg0, %arg1 : i32
    %9 = arith.extui %8 : i1 to i32
    %c0_i32_7 = arith.constant 0 : i32
    %10 = arith.cmpi ne, %9, %c0_i32_7 : i32
    scf.if %10 {
      %17 = tpu.iota {dimensions = array<i32: 0>} : vector<8x16xi32>
      %18 = tpu.iota {dimensions = array<i32: 1>} : vector<8x16xi32>
      %19 = arith.cmpi eq, %17, %18 : vector<8x16xi32>
      %cst_11 = arith.constant 0.000000e+00 : f32
      %20 = vector.broadcast %cst_11 : f32 to vector<8x16xf32>
      %21 = arith.select %19, %7, %20 : vector<8x16xi1>, vector<8x16xf32>
      %cst_12 = arith.constant dense<0.000000e+00> : vector<16xf32>
      %22 = vector.multi_reduction <add>, %21, %cst_12 [0] : vector<8x16xf32> to vector<16xf32>
      %23 = vector.shape_cast %22 : vector<16xf32> to vector<1x16xf32>
      %24 = vector.extract_strided_slice %23 {offsets = [0, 0], sizes = [1, 8], strides = [1, 1]} : vector<1x16xf32> to vector<1x8xf32>
      %c0_13 = arith.constant 0 : index
      %c0_14 = arith.constant 0 : index
      %25 = vector.load %arg7[%c0_13, %c0_14] : memref<1x8xf32, #tpu.memory_space<vmem>>, vector<1x8xf32>
      tpu.vector_store %arg7[%c0_13, %c0_14], %24 {strides = array<i32>} : memref<1x8xf32, #tpu.memory_space<vmem>>, vector<1x8xf32>,
      %26 = arith.cmpi eq, %17, %18 : vector<8x16xi32>
      %cst_15 = arith.constant -1.000000e+09 : f32
      %27 = vector.broadcast %cst_15 : f32 to vector<8x16xf32>
      %28 = arith.select %26, %27, %6 : vector<8x16xi1>, vector<8x16xf32>
      %c8_i32 = arith.constant 8 : i32
      %29 = vector.broadcast %c8_i32 : i32 to vector<8x16xi32>
      %30 = arith.addi %17, %29 : vector<8x16xi32>
      %31 = arith.cmpi eq, %30, %18 : vector<8x16xi32>
      %cst_16 = arith.constant -1.000000e+09 : f32
      %32 = vector.broadcast %cst_16 : f32 to vector<8x16xf32>
      %33 = arith.select %31, %32, %7 : vector<8x16xi1>, vector<8x16xf32>
      %c0_17 = arith.constant 0 : index
      %c0_18 = arith.constant 0 : index
      %34 = vector.load %arg8[%c0_17, %c0_18] : memref<1x16xf32, #tpu.memory_space<vmem>>, vector<1x16xf32>
      %cst_19 = arith.constant dense<0xFF800000> : vector<16xf32>
      %35 = vector.multi_reduction <maximumf>, %28, %cst_19 [0] : vector<8x16xf32> to vector<16xf32>
      %36 = vector.shape_cast %35 : vector<16xf32> to vector<1x16xf32>
      %cst_20 = arith.constant dense<0xFF800000> : vector<16xf32>
      %37 = vector.multi_reduction <maximumf>, %33, %cst_20 [0] : vector<8x16xf32> to vector<16xf32>
      %38 = vector.shape_cast %37 : vector<16xf32> to vector<1x16xf32>
      %39 = arith.maximumf %36, %38 : vector<1x16xf32>
      %40 = arith.maximumf %34, %39 : vector<1x16xf32>
      %41 = arith.subf %34, %40 : vector<1x16xf32>
      %42 = math.exp %41 : vector<1x16xf32>
      %c0_21 = arith.constant 0 : index
      %c0_22 = arith.constant 0 : index
      %43 = vector.load %arg9[%c0_21, %c0_22] : memref<1x16xf32, #tpu.memory_space<vmem>>, vector<1x16xf32>
      %44 = arith.mulf %43, %42 : vector<1x16xf32>
      %45 = vector.broadcast %40 : vector<1x16xf32> to vector<8x16xf32>
      %46 = arith.subf %28, %45 : vector<8x16xf32>
      %47 = math.exp %46 : vector<8x16xf32>
      %cst_23 = arith.constant dense<0.000000e+00> : vector<16xf32>
      %48 = vector.multi_reduction <add>, %47, %cst_23 [0] : vector<8x16xf32> to vector<16xf32>
      %49 = vector.shape_cast %48 : vector<16xf32> to vector<1x16xf32>
      %50 = arith.addf %44, %49 : vector<1x16xf32>
      %51 = vector.broadcast %40 : vector<1x16xf32> to vector<8x16xf32>
      %52 = arith.subf %33, %51 : vector<8x16xf32>
      %53 = math.exp %52 : vector<8x16xf32>
      %cst_24 = arith.constant dense<0.000000e+00> : vector<16xf32>
      %54 = vector.multi_reduction <add>, %53, %cst_24 [0] : vector<8x16xf32> to vector<16xf32>
      %55 = vector.shape_cast %54 : vector<16xf32> to vector<1x16xf32>
      %56 = arith.addf %50, %55 : vector<1x16xf32>
      %c0_25 = arith.constant 0 : index
      %c0_26 = arith.constant 0 : index
      %57 = vector.load %arg9[%c0_25, %c0_26] : memref<1x16xf32, #tpu.memory_space<vmem>>, vector<1x16xf32>
      tpu.vector_store %arg9[%c0_25, %c0_26], %56 {strides = array<i32>} : memref<1x16xf32, #tpu.memory_space<vmem>>, vector<1x16xf32>,
      %c0_27 = arith.constant 0 : index
      %c0_28 = arith.constant 0 : index
      %58 = vector.load %arg8[%c0_27, %c0_28] : memref<1x16xf32, #tpu.memory_space<vmem>>, vector<1x16xf32>
      tpu.vector_store %arg8[%c0_27, %c0_28], %40 {strides = array<i32>} : memref<1x16xf32, #tpu.memory_space<vmem>>, vector<1x16xf32>,
    } else {
    }
    %11 = arith.cmpi ne, %arg0, %arg1 : i32
    %12 = arith.extui %11 : i1 to i32
    %c0_i32_8 = arith.constant 0 : i32
    %13 = arith.cmpi ne, %12, %c0_i32_8 : i32
    scf.if %13 {
      %c0_11 = arith.constant 0 : index
      %c0_12 = arith.constant 0 : index
      %17 = vector.load %arg8[%c0_11, %c0_12] : memref<1x16xf32, #tpu.memory_space<vmem>>, vector<1x16xf32>
      %cst_13 = arith.constant dense<0xFF800000> : vector<16xf32>
      %18 = vector.multi_reduction <maximumf>, %6, %cst_13 [0] : vector<8x16xf32> to vector<16xf32>
      %19 = vector.shape_cast %18 : vector<16xf32> to vector<1x16xf32>
      %cst_14 = arith.constant dense<0xFF800000> : vector<16xf32>
      %20 = vector.multi_reduction <maximumf>, %7, %cst_14 [0] : vector<8x16xf32> to vector<16xf32>
      %21 = vector.shape_cast %20 : vector<16xf32> to vector<1x16xf32>
      %22 = arith.maximumf %19, %21 : vector<1x16xf32>
      %23 = arith.maximumf %17, %22 : vector<1x16xf32>
      %24 = arith.subf %17, %23 : vector<1x16xf32>
      %25 = math.exp %24 : vector<1x16xf32>
      %c0_15 = arith.constant 0 : index
      %c0_16 = arith.constant 0 : index
      %26 = vector.load %arg9[%c0_15, %c0_16] : memref<1x16xf32, #tpu.memory_space<vmem>>, vector<1x16xf32>
      %27 = arith.mulf %26, %25 : vector<1x16xf32>
      %28 = vector.broadcast %23 : vector<1x16xf32> to vector<8x16xf32>
      %29 = arith.subf %6, %28 : vector<8x16xf32>
      %30 = math.exp %29 : vector<8x16xf32>
      %cst_17 = arith.constant dense<0.000000e+00> : vector<16xf32>
      %31 = vector.multi_reduction <add>, %30, %cst_17 [0] : vector<8x16xf32> to vector<16xf32>
      %32 = vector.shape_cast %31 : vector<16xf32> to vector<1x16xf32>
      %33 = arith.addf %27, %32 : vector<1x16xf32>
      %34 = vector.broadcast %23 : vector<1x16xf32> to vector<8x16xf32>
      %35 = arith.subf %7, %34 : vector<8x16xf32>
      %36 = math.exp %35 : vector<8x16xf32>
      %cst_18 = arith.constant dense<0.000000e+00> : vector<16xf32>
      %37 = vector.multi_reduction <add>, %36, %cst_18 [0] : vector<8x16xf32> to vector<16xf32>
      %38 = vector.shape_cast %37 : vector<16xf32> to vector<1x16xf32>
      %39 = arith.addf %33, %38 : vector<1x16xf32>
      %c0_19 = arith.constant 0 : index
      %c0_20 = arith.constant 0 : index
      %40 = vector.load %arg9[%c0_19, %c0_20] : memref<1x16xf32, #tpu.memory_space<vmem>>, vector<1x16xf32>
      tpu.vector_store %arg9[%c0_19, %c0_20], %39 {strides = array<i32>} : memref<1x16xf32, #tpu.memory_space<vmem>>, vector<1x16xf32>,
      %c0_21 = arith.constant 0 : index
      %c0_22 = arith.constant 0 : index
      %41 = vector.load %arg8[%c0_21, %c0_22] : memref<1x16xf32, #tpu.memory_space<vmem>>, vector<1x16xf32>
      tpu.vector_store %arg8[%c0_21, %c0_22], %23 {strides = array<i32>} : memref<1x16xf32, #tpu.memory_space<vmem>>, vector<1x16xf32>,
    } else {
    }
    %c0_i32_9 = arith.constant 0 : i32
    %14 = arith.cmpi eq, %arg1, %c0_i32_9 : i32
    %15 = arith.extui %14 : i1 to i32
    %c0_i32_10 = arith.constant 0 : i32
    %16 = arith.cmpi ne, %15, %c0_i32_10 : i32
    scf.if %16 {
      %c0_11 = arith.constant 0 : index
      %c0_12 = arith.constant 0 : index
      %17 = vector.load %arg8[%c0_11, %c0_12] : memref<1x16xf32, #tpu.memory_space<vmem>>, vector<1x16xf32>
      %c0_13 = arith.constant 0 : index
      %c0_14 = arith.constant 0 : index
      %18 = vector.load %arg9[%c0_13, %c0_14] : memref<1x16xf32, #tpu.memory_space<vmem>>, vector<1x16xf32>
      %19 = math.log %18 : vector<1x16xf32>
      %20 = arith.addf %17, %19 : vector<1x16xf32>
      %c0_15 = arith.constant 0 : index
      %c0_16 = arith.constant 0 : index
      %21 = vector.load %arg6[%c0_15, %c0_16] : memref<1x16xf32, #tpu.memory_space<vmem>>, vector<1x16xf32>
      tpu.vector_store %arg6[%c0_15, %c0_16], %20 {strides = array<i32>} : memref<1x16xf32, #tpu.memory_space<vmem>>, vector<1x16xf32>,
    } else {
    }
    return
  }
  func.func @transform_0(%arg0: i32, %arg1: i32) -> (i32, i32) {
    %c0_i32 = arith.constant 0 : i32
    %c0_i32_0 = arith.constant 0 : i32
    return %arg0, %c0_i32 : i32, i32
  }
  func.func @transform_1(%arg0: i32, %arg1: i32) -> (i32, i32) {
    %c0_i32 = arith.constant 0 : i32
    %c0_i32_0 = arith.constant 0 : i32
    return %arg0, %c0_i32 : i32, i32
  }
  func.func @transform_2(%arg0: i32, %arg1: i32) -> (i32, i32) {
    %c0_i32 = arith.constant 0 : i32
    %c0_i32_0 = arith.constant 0 : i32
    return %arg1, %c0_i32 : i32, i32
  }
  func.func @transform_3(%arg0: i32, %arg1: i32) -> (i32, i32) {
    %c0_i32 = arith.constant 0 : i32
    %c0_i32_0 = arith.constant 0 : i32
    return %arg1, %c0_i32 : i32, i32
  }
  func.func @transform_4(%arg0: i32, %arg1: i32) -> (i32, i32) {
    %c0_i32 = arith.constant 0 : i32
    %c0_i32_0 = arith.constant 0 : i32
    return %c0_i32, %arg0 : i32, i32
  }
  func.func @transform_5(%arg0: i32, %arg1: i32) -> (i32, i32) {
    %c0_i32 = arith.constant 0 : i32
    %c0_i32_0 = arith.constant 0 : i32
    return %c0_i32, %arg0 : i32, i32
  }
}

</mosaic_0001>

<llo_original>
// kernel: tpu_custom_call.1
$region0: #{tpu_custom_call.1}
  #allocation0 [shape = 'u32[]', space=smem, size = 0x4, offset = 0x4, fixed_abs, tag = 'smem constant byte address 0x4 - core index']
  #allocation1 [shape = 'u32[144,128]{1,0:T(1,128)}', space=vmem, size = 0x12000, scoped, tag = 'internal scratch']
  #allocation2 [shape = 'f32[1,16]{1,0:T(1,128)}', space=vmem, size = 0x200, scoped, tag = 'scratch operand']
  #allocation3 [shape = 'f32[1,16]{1,0:T(1,128)}', space=vmem, size = 0x200, scoped, tag = 'scratch operand']
  #allocation4 [shape = 'f32[16,32]{1,0:T(8,128)}', space=vmem, size = 0x2000, scoped, tag = 'scratch operand']
  %s0 = inlined_call_operand.hbm [shape: f32[8,32], index: 0, kind: input, shape index: {}]
  %s1 = inlined_call_operand.hbm [shape: f32[8,32], index: 1, kind: input, shape index: {}]
  %s2 = inlined_call_operand.hbm [shape: f32[8,32], index: 2, kind: input, shape index: {}]
  %s3 = inlined_call_operand.vmem [shape: f32[8,32], index: 3, kind: input, shape index: {}]
  %s4 = inlined_call_operand.hbm [shape: f32[1,16], index: 4, kind: output, shape index: {0}]
  %s5 = inlined_call_operand.hbm [shape: f32[1,8], index: 5, kind: output, shape index: {1}]
  %6 = xla_tuple %s4, %s5
  %s7 = sld [smem:[#allocation0]]
  $region62: #{tpu_custom_call.1} parent=0
    _
  %s9 = ssub.s32 1, %s7
  %s10 = scalar_select 0, %s9, %s7
  $region1: #{tpu_custom_call.1} parent=0
    #allocation5 [shape = 'u8[4096]{0}', space=vmem, size = 0x1000, scoped, tag = 'input window, operand 0, single buffered']
    #allocation6 [shape = 's32[1]{0}', space=sflag, size = 0x4, scoped, tag = 'scoped memory for tpu_custom_call.1']
    #allocation7 [shape = 's32[1]{0}', space=sflag, size = 0x4, scoped, tag = 'scoped memory for tpu_custom_call.1']
    #allocation8 [shape = 'u8[4096]{0}', space=vmem, size = 0x1000, scoped, tag = 'input window, operand 1, single buffered']
    #allocation9 [shape = 's32[1]{0}', space=sflag, size = 0x4, scoped, tag = 'scoped memory for tpu_custom_call.1']
    #allocation10 [shape = 'u8[4096]{0}', space=vmem, size = 0x1000, scoped, tag = 'input window, operand 2, single buffered']
    #allocation11 [shape = 'u8[512]{0}', space=vmem, size = 0x400, scoped, tag = 'output window, operand 0, single buffered']
    #allocation12 [shape = 'u8[512]{0}', space=vmem, size = 0x400, scoped, tag = 'output window, operand 1, single buffered']
    #allocation13 [shape = 's32[1]{0}', space=sflag, size = 0x4, scoped, tag = 'scoped memory for tpu_custom_call.1']
    %11 = vsyncpa [#allocation6], 0
    %12 = vsyncpa [#allocation9], 0
    %13 = vsyncpa [#allocation7], 0
    %14 = vsyncpa [#allocation13], 0
    // Predicated region
    $region2: #{tpu_custom_call.1} parent=1 // pred_check
      _
    $region3: #{tpu_custom_call.1} parent=1 // pred_check_branch
      %16 = sbr.rel (0) target = $region5
    $region4: #{tpu_custom_call.1} parent=1 // pred_region
      %s18 = ssub.s32 128, 128
      %19 = vsyncadd [#allocation6], %s18
      %s21 = sshll.u32 [#allocation5], 4
      %s22 = int_to_ptr.vmem [resolvable:$true] %s21
      %24 = dma.hbm_to_vmem [thread:$0]  %s0, 128, %s22, [#allocation6]
    $region5: #{tpu_custom_call.1} parent=1 // pred_fallthru
      _
    // Predicated region
    $region6: #{tpu_custom_call.1} parent=1 // pred_check
      _
    $region7: #{tpu_custom_call.1} parent=1 // pred_check_branch
      %26 = sbr.rel (0) target = $region9
    $region8: #{tpu_custom_call.1} parent=1 // pred_region
      %s28 = ssub.s32 128, 128
      %29 = vsyncadd [#allocation9], %s28
      %s31 = sshll.u32 [#allocation8], 4
      %s32 = int_to_ptr.vmem [resolvable:$true] %s31
      %34 = dma.hbm_to_vmem [thread:$0]  %s1, 128, %s32, [#allocation9]
    $region9: #{tpu_custom_call.1} parent=1 // pred_fallthru
      _
    // Predicated region
    $region10: #{tpu_custom_call.1} parent=1 // pred_check
      _
    $region11: #{tpu_custom_call.1} parent=1 // pred_check_branch
      %36 = sbr.rel (0) target = $region13
    $region12: #{tpu_custom_call.1} parent=1 // pred_region
      %s38 = ssub.s32 128, 128
      %39 = vsyncadd [#allocation9], %s38
      %s41 = sshll.u32 [#allocation10], 4
      %s42 = int_to_ptr.vmem [resolvable:$true] %s41
      %44 = dma.hbm_to_vmem [thread:$0]  %s2, 128, %s42, [#allocation9]
    $region13: #{tpu_custom_call.1} parent=1 // pred_fallthru
      _
    // Predicated region
    $region14: #{tpu_custom_call.1} parent=1 // pred_check
      _
    $region15: #{tpu_custom_call.1} parent=1 // pred_check_branch
      %46 = sbr.rel (0) target = $region17
    $region16: #{tpu_custom_call.1} parent=1 // pred_region
      _
    $region17: #{tpu_custom_call.1} parent=1 // pred_fallthru
      _
    // Predicated region
    $region18: #{tpu_custom_call.1} parent=1 // pred_check
      _
    $region19: #{tpu_custom_call.1} parent=1 // pred_check_branch
      %48 = sbr.rel (0) target = $region21
    $region20: #{tpu_custom_call.1} parent=1 // pred_region
      %49 = dma.done [#allocation6], 128
    $region21: #{tpu_custom_call.1} parent=1 // pred_fallthru
      _
    // Predicated region
    $region22: #{tpu_custom_call.1} parent=1 // pred_check
      _
    $region23: #{tpu_custom_call.1} parent=1 // pred_check_branch
      %51 = sbr.rel (0) target = $region25
    $region24: #{tpu_custom_call.1} parent=1 // pred_region
      %52 = dma.done [#allocation9], 128
    $region25: #{tpu_custom_call.1} parent=1 // pred_fallthru
      _
    // Predicated region
    $region26: #{tpu_custom_call.1} parent=1 // pred_check
      _
    $region27: #{tpu_custom_call.1} parent=1 // pred_check_branch
      %54 = sbr.rel (0) target = $region29
    $region28: #{tpu_custom_call.1} parent=1 // pred_region
      %55 = dma.done [#allocation9], 128
    $region29: #{tpu_custom_call.1} parent=1 // pred_fallthru
      _
    %p56 = scmp.eq.s32.totalorder 0, 0
    // Predicated region
    $region30: #{tpu_custom_call.1} parent=1 // pred_check
      %p57 = pneg %p56
    $region31: #{tpu_custom_call.1} parent=1 // pred_check_branch
      %59 = sbr.rel (%p57) target = $region33
    $region32: #{tpu_custom_call.1} parent=1 // pred_region
      %vm60 = vcmask 122880
      %61 = vst.msk [vmem:[#allocation2] sm:$0x1] %vm60, -inf
      %62 = vst.msk [vmem:[#allocation3] sm:$0x1] %vm60, 0.0
      %v63 = vld [vmem:[#allocation5] sm:$0xff]
      %v64 = vmul.f32 %v63, 16.666666
      %vm65 = vcmask 261120
      %66 = vst.msk [vmem:[#allocation4] sm:$0xff] %vm65, %v64
      %v67 = vld [vmem:[#allocation8] sm:$0xff]
      %v68 = vmul.f32 %v67, 16.666666
      %69 = vst.msk [vmem:[#allocation4 + $0x8] sm:$0xff] %vm65, %v68
    $region33: #{tpu_custom_call.1} parent=1 // pred_fallthru
      _
    %v70 = vld [vmem:[#allocation4] sm:$0xff]
    %v71 = vld [vmem:[#allocation4 + $0x8] sm:$0xff]
    %v72 = vld [vmem:[#allocation10] sm:$0xff]
    %v73 = vld [vmem:[%s3] sm:$0xff]
    %vm74 = vcmask 261120
    %v76 = vsel %vm74, %v72, 0
    %v79 = vsel %vm74, %v70, 0
    %v82 = vsel %vm74, %v71, 0
    %84 = vmatprep.subr.mxu0 0.0
    %85 = vmatpush1.xpose.msra.mxu0 %v79
    %86 = vmatprep.subr.mxu0 0.0
    %87 = vmatpush1.xpose.msra.mxu0 %v82
    %88 = vmatprep.subr.mxu0 0.0
    %89 = vmatpush1.xpose.msra.mxu0 0.0
    %90 = vmatprep.subr.mxu0 0.0
    %91 = vmatpush1.xpose.msra.mxu0 0.0
    %92 = vmatprep.subr.mxu0 0.0
    %93 = vmatpush1.xpose.msra.mxu0 0.0
    %94 = vmatprep.subr.mxu0 0.0
    %95 = vmatpush1.xpose.msra.mxu0 0.0
    %96 = vmatprep.subr.mxu0 0.0
    %97 = vmatpush1.xpose.msra.mxu0 0.0
    %98 = vmatprep.subr.mxu0 0.0
    %99 = vmatpush1.xpose.msra.mxu0 0.0
    %100 = vmatprep.subr.mxu0 0.0
    %101 = vmatpush1.xpose.msra.mxu0 0.0
    %102 = vmatprep.subr.mxu0 0.0
    %103 = vmatpush1.xpose.msra.mxu0 0.0
    %104 = vmatprep.subr.mxu0 0.0
    %105 = vmatpush1.xpose.msra.mxu0 0.0
    %106 = vmatprep.subr.mxu0 0.0
    %107 = vmatpush1.xpose.msra.mxu0 0.0
    %108 = vmatprep.subr.mxu0 0.0
    %109 = vmatpush1.xpose.msra.mxu0 0.0
    %110 = vmatprep.subr.mxu0 0.0
    %111 = vmatpush1.xpose.msra.mxu0 0.0
    %112 = vmatprep.subr.mxu0 0.0
    %113 = vmatpush1.xpose.msra.mxu0 0.0
    %114 = vmatprep.subr.mxu0 0.0
    %115 = vmatpush1.xpose.msra.mxu0 0.0
    %116 = vmatprep.subr.mxu0 0.0
    %117 = vmatpush1.xpose.msra.mxu0 0.0
    %118 = vmatprep.subr.mxu0 0.0
    %119 = vmatpush1.xpose.msra.mxu0 0.0
    %120 = vmatprep.subr.mxu0 0.0
    %121 = vmatpush1.xpose.msra.mxu0 0.0
    %122 = vmatprep.subr.mxu0 0.0
    %123 = vmatpush1.xpose.msra.mxu0 0.0
    %124 = vmatprep.subr.mxu0 0.0
    %125 = vmatpush1.xpose.msra.mxu0 0.0
    %126 = vmatprep.subr.mxu0 0.0
    %127 = vmatpush1.xpose.msra.mxu0 0.0
    %128 = vmatprep.subr.mxu0 0.0
    %129 = vmatpush1.xpose.msra.mxu0 0.0
    %130 = vmatprep.subr.mxu0 0.0
    %131 = vmatpush1.xpose.msra.mxu0 0.0
    %132 = vmatprep.subr.mxu0 0.0
    %133 = vmatpush1.xpose.msra.mxu0 0.0
    %134 = vmatprep.subr.mxu0 0.0
    %135 = vmatpush1.xpose.msra.mxu0 0.0
    %136 = vmatprep.subr.mxu0 0.0
    %137 = vmatpush1.xpose.msra.mxu0 0.0
    %138 = vmatprep.subr.mxu0 0.0
    %139 = vmatpush1.xpose.msra.mxu0 0.0
    %140 = vmatprep.subr.mxu0 0.0
    %141 = vmatpush1.xpose.msra.mxu0 0.0
    %142 = vmatprep.subr.mxu0 0.0
    %143 = vmatpush1.xpose.msra.mxu0 0.0
    %144 = vmatprep.subr.mxu0 0.0
    %145 = vmatpush1.xpose.msra.mxu0 0.0
    %146 = vmatprep.subr.mxu0 0.0
    %147 = vmatpush1.xpose.msra.mxu0 0.0
    %148 = vmatprep.mubr.f32.mxu0 0.0
    %149 = vmatmul.mubr.f32.gmra.mrb[0].mxu0 %v76
    %v150 = vpop.f32.mrb[0].mxu0
    %v151 = vadd.f32 0.0, %v150
    %v152 = vpop.f32.mrb[0].mxu0
    %153 = vdwg.mxu0
    %v155 = vsel %vm74, %v73, 0
    %157 = vmatprep.subr.mxu0 0.0
    %158 = vmatpush1.xpose.msra.mxu0 %v79
    %159 = vmatprep.subr.mxu0 0.0
    %160 = vmatpush1.xpose.msra.mxu0 %v82
    %161 = vmatprep.subr.mxu0 0.0
    %162 = vmatpush1.xpose.msra.mxu0 0.0
    %163 = vmatprep.subr.mxu0 0.0
    %164 = vmatpush1.xpose.msra.mxu0 0.0
    %165 = vmatprep.subr.mxu0 0.0
    %166 = vmatpush1.xpose.msra.mxu0 0.0
    %167 = vmatprep.subr.mxu0 0.0
    %168 = vmatpush1.xpose.msra.mxu0 0.0
    %169 = vmatprep.subr.mxu0 0.0
    %170 = vmatpush1.xpose.msra.mxu0 0.0
    %171 = vmatprep.subr.mxu0 0.0
    %172 = vmatpush1.xpose.msra.mxu0 0.0
    %173 = vmatprep.subr.mxu0 0.0
    %174 = vmatpush1.xpose.msra.mxu0 0.0
    %175 = vmatprep.subr.mxu0 0.0
    %176 = vmatpush1.xpose.msra.mxu0 0.0
    %177 = vmatprep.subr.mxu0 0.0
    %178 = vmatpush1.xpose.msra.mxu0 0.0
    %179 = vmatprep.subr.mxu0 0.0
    %180 = vmatpush1.xpose.msra.mxu0 0.0
    %181 = vmatprep.subr.mxu0 0.0
    %182 = vmatpush1.xpose.msra.mxu0 0.0
    %183 = vmatprep.subr.mxu0 0.0
    %184 = vmatpush1.xpose.msra.mxu0 0.0
    %185 = vmatprep.subr.mxu0 0.0
    %186 = vmatpush1.xpose.msra.mxu0 0.0
    %187 = vmatprep.subr.mxu0 0.0
    %188 = vmatpush1.xpose.msra.mxu0 0.0
    %189 = vmatprep.subr.mxu0 0.0
    %190 = vmatpush1.xpose.msra.mxu0 0.0
    %191 = vmatprep.subr.mxu0 0.0
    %192 = vmatpush1.xpose.msra.mxu0 0.0
    %193 = vmatprep.subr.mxu0 0.0
    %194 = vmatpush1.xpose.msra.mxu0 0.0
    %195 = vmatprep.subr.mxu0 0.0
    %196 = vmatpush1.xpose.msra.mxu0 0.0
    %197 = vmatprep.subr.mxu0 0.0
    %198 = vmatpush1.xpose.msra.mxu0 0.0
    %199 = vmatprep.subr.mxu0 0.0
    %200 = vmatpush1.xpose.msra.mxu0 0.0
    %201 = vmatprep.subr.mxu0 0.0
    %202 = vmatpush1.xpose.msra.mxu0 0.0
    %203 = vmatprep.subr.mxu0 0.0
    %204 = vmatpush1.xpose.msra.mxu0 0.0
    %205 = vmatprep.subr.mxu0 0.0
    %206 = vmatpush1.xpose.msra.mxu0 0.0
    %207 = vmatprep.subr.mxu0 0.0
    %208 = vmatpush1.xpose.msra.mxu0 0.0
    %209 = vmatprep.subr.mxu0 0.0
    %210 = vmatpush1.xpose.msra.mxu0 0.0
    %211 = vmatprep.subr.mxu0 0.0
    %212 = vmatpush1.xpose.msra.mxu0 0.0
    %213 = vmatprep.subr.mxu0 0.0
    %214 = vmatpush1.xpose.msra.mxu0 0.0
    %215 = vmatprep.subr.mxu0 0.0
    %216 = vmatpush1.xpose.msra.mxu0 0.0
    %217 = vmatprep.subr.mxu0 0.0
    %218 = vmatpush1.xpose.msra.mxu0 0.0
    %219 = vmatprep.subr.mxu0 0.0
    %220 = vmatpush1.xpose.msra.mxu0 0.0
    %221 = vmatprep.mubr.f32.mxu0 0.0
    %222 = vmatmul.mubr.f32.gmra.mrb[0].mxu0 %v155
    %v223 = vpop.f32.mrb[0].mxu0
    %v224 = vadd.f32 0.0, %v223
    %v225 = vpop.f32.mrb[0].mxu0
    %226 = vdwg.mxu0
    %p227 = scmp.eq.s32.totalorder 0, 0
    // Predicated region
    $region34: #{tpu_custom_call.1} parent=1 // pred_check
      %p228 = pneg %p227
    $region35: #{tpu_custom_call.1} parent=1 // pred_check_branch
      %230 = sbr.rel (%p228) target = $region37
    $region36: #{tpu_custom_call.1} parent=1 // pred_region
      %v231 = vlaneseq
      %v232 = vshrl.u32 %v231, 7
      %v233 = vlaneseq
      %v234 = vand.u32 %v233, 127
      %vm235 = vcmp.eq.s32.totalorder %v232, %v234
      %v236 = vsel %vm235, %v224, 0.0
      %vm237 = vcmask 130048
      %v238 = vsel %vm237, %v236, 0.0
      %v239 = vrot.slane %v238, 4
      %v240 = vadd.f32 %v238, %v239
      %v241 = vrot.slane %v240, 2
      %v242 = vadd.f32 %v240, %v241
      %v243 = vrot.slane %v242, 1
      %v244 = vadd.f32 %v242, %v243
      %vm245 = vcmask 57344
      %246 = vst.msk [vmem:[#allocation12] sm:$0x1] %vm245, %v244
      %v247 = vsel %vm235, -1e+09, %v151
      %v248 = vadd.s32 %v232, 8
      %vm249 = vcmp.eq.s32.totalorder %v248, %v234
      %v250 = vsel %vm249, -1e+09, %v224
      %v251 = vld [vmem:[#allocation2] sm:$0x1]
      %v252 = vsel %vm237, %v247, -inf
      %v253 = vrot.slane %v252, 4
      %v254 = vmax.f32 %v252, %v253
      %v255 = vrot.slane %v254, 2
      %v256 = vmax.f32 %v254, %v255
      %v257 = vrot.slane %v256, 1
      %v258 = vmax.f32 %v256, %v257
      %v259 = vsel %vm237, %v250, -inf
      %v260 = vrot.slane %v259, 4
      %v261 = vmax.f32 %v259, %v260
      %v262 = vrot.slane %v261, 2
      %v263 = vmax.f32 %v261, %v262
      %v264 = vrot.slane %v263, 1
      %v265 = vmax.f32 %v263, %v264
      %v266 = vmax.f32 %v258, %v265
      %v267 = vmax.f32 %v251, %v266
      %v268 = vsub.f32 %v251, %v267
      %v269 = vmul.f32 %v268, 1.442695
      %v270 = vpow.pop %v269
      %v271 = vld [vmem:[#allocation3] sm:$0x1]
      %v272 = vmul.f32 %v271, %v270
      %v274 = vlaneseq
      %v275 = vshrl.u32 %v274, 7
      %v276 = vsub.s32 0, %v275
      %v277 = vrot.slane %v267, %v276
      %v279 = vsub.f32 %v247, %v277
      %v280 = vmul.f32 %v279, 1.442695
      %v281 = vpow.pop %v280
      %v282 = vsel %vm237, %v281, 0.0
      %v283 = vrot.slane %v282, 4
      %v284 = vadd.f32 %v282, %v283
      %v285 = vrot.slane %v284, 2
      %v286 = vadd.f32 %v284, %v285
      %v287 = vrot.slane %v286, 1
      %v288 = vadd.f32 %v286, %v287
      %v289 = vadd.f32 %v272, %v288
      %v290 = vsub.f32 %v250, %v277
      %v291 = vmul.f32 %v290, 1.442695
      %v292 = vpow.pop %v291
      %v293 = vsel %vm237, %v292, 0.0
      %v294 = vrot.slane %v293, 4
      %v295 = vadd.f32 %v293, %v294
      %v296 = vrot.slane %v295, 2
      %v297 = vadd.f32 %v295, %v296
      %v298 = vrot.slane %v297, 1
      %v299 = vadd.f32 %v297, %v298
      %v300 = vadd.f32 %v289, %v299
      %vm301 = vcmask 122880
      %302 = vst.msk [vmem:[#allocation3] sm:$0x1] %vm301, %v300
      %303 = vst.msk [vmem:[#allocation2] sm:$0x1] %vm301, %v267
    $region37: #{tpu_custom_call.1} parent=1 // pred_fallthru
      _
    %p304 = scmp.ne.s32.totalorder 0, 0
    // Predicated region
    $region38: #{tpu_custom_call.1} parent=1 // pred_check
      %p305 = pneg %p304
    $region39: #{tpu_custom_call.1} parent=1 // pred_check_branch
      %307 = sbr.rel (%p305) target = $region41
    $region40: #{tpu_custom_call.1} parent=1 // pred_region
      %v308 = vld [vmem:[#allocation2] sm:$0x1]
      %vm309 = vcmask 130048
      %v310 = vsel %vm309, %v151, -inf
      %v311 = vrot.slane %v310, 4
      %v312 = vmax.f32 %v310, %v311
      %v313 = vrot.slane %v312, 2
      %v314 = vmax.f32 %v312, %v313
      %v315 = vrot.slane %v314, 1
      %v316 = vmax.f32 %v314, %v315
      %v317 = vsel %vm309, %v224, -inf
      %v318 = vrot.slane %v317, 4
      %v319 = vmax.f32 %v317, %v318
      %v320 = vrot.slane %v319, 2
      %v321 = vmax.f32 %v319, %v320
      %v322 = vrot.slane %v321, 1
      %v323 = vmax.f32 %v321, %v322
      %v324 = vmax.f32 %v316, %v323
      %v325 = vmax.f32 %v308, %v324
      %v326 = vsub.f32 %v308, %v325
      %v327 = vmul.f32 %v326, 1.442695
      %v328 = vpow.pop %v327
      %v329 = vld [vmem:[#allocation3] sm:$0x1]
      %v330 = vmul.f32 %v329, %v328
      %v332 = vlaneseq
      %v333 = vshrl.u32 %v332, 7
      %v334 = vsub.s32 0, %v333
      %v335 = vrot.slane %v325, %v334
      %v337 = vsub.f32 %v151, %v335
      %v338 = vmul.f32 %v337, 1.442695
      %v339 = vpow.pop %v338
      %v340 = vsel %vm309, %v339, 0.0
      %v341 = vrot.slane %v340, 4
      %v342 = vadd.f32 %v340, %v341
      %v343 = vrot.slane %v342, 2
      %v344 = vadd.f32 %v342, %v343
      %v345 = vrot.slane %v344, 1
      %v346 = vadd.f32 %v344, %v345
      %v347 = vadd.f32 %v330, %v346
      %v348 = vsub.f32 %v224, %v335
      %v349 = vmul.f32 %v348, 1.442695
      %v350 = vpow.pop %v349
      %v351 = vsel %vm309, %v350, 0.0
      %v352 = vrot.slane %v351, 4
      %v353 = vadd.f32 %v351, %v352
      %v354 = vrot.slane %v353, 2
      %v355 = vadd.f32 %v353, %v354
      %v356 = vrot.slane %v355, 1
      %v357 = vadd.f32 %v355, %v356
      %v358 = vadd.f32 %v347, %v357
      %vm359 = vcmask 122880
      %360 = vst.msk [vmem:[#allocation3] sm:$0x1] %vm359, %v358
      %361 = vst.msk [vmem:[#allocation2] sm:$0x1] %vm359, %v325
    $region41: #{tpu_custom_call.1} parent=1 // pred_fallthru
      _
    // Predicated region
    $region42: #{tpu_custom_call.1} parent=1 // pred_check
      %p362 = pneg %p56
    $region43: #{tpu_custom_call.1} parent=1 // pred_check_branch
      %364 = sbr.rel (%p362) target = $region45
    $region44: #{tpu_custom_call.1} parent=1 // pred_region
      %v365 = vld [vmem:[#allocation2] sm:$0x1]
      %v366 = vld [vmem:[#allocation3] sm:$0x1]
      %v367 = vlog2.pop %v366
      %v368 = vmul.f32 %v367, 0.6931472
      %v369 = vadd.f32 %v365, %v368
      %vm370 = vcmask 122880
      %371 = vst.msk [vmem:[#allocation11] sm:$0x1] %vm370, %v369
    $region45: #{tpu_custom_call.1} parent=1 // pred_fallthru
      _
    // Predicated region
    $region46: #{tpu_custom_call.1} parent=1 // pred_check
      _
    $region47: #{tpu_custom_call.1} parent=1 // pred_check_branch
      %373 = sbr.rel (0) target = $region49
    $region48: #{tpu_custom_call.1} parent=1 // pred_region
      %s375 = ssub.s32 16, 16
      %376 = vsyncadd [#allocation7], %s375
      %s378 = sshll.u32 [#allocation11], 4
      %s379 = int_to_ptr.vmem [resolvable:$true] %s378
      %381 = dma.vmem_to_hbm [thread:$0]  %s379, 16, %s4, [#allocation7]
    $region49: #{tpu_custom_call.1} parent=1 // pred_fallthru
      _
    // Predicated region
    $region50: #{tpu_custom_call.1} parent=1 // pred_check
      _
    $region51: #{tpu_custom_call.1} parent=1 // pred_check_branch
      %383 = sbr.rel (0) target = $region53
    $region52: #{tpu_custom_call.1} parent=1 // pred_region
      %s385 = ssub.s32 16, 16
      %386 = vsyncadd [#allocation13], %s385
      %s388 = sshll.u32 [#allocation12], 4
      %s389 = int_to_ptr.vmem [resolvable:$true] %s388
      %391 = dma.vmem_to_hbm [thread:$0]  %s389, 16, %s5, [#allocation13]
    $region53: #{tpu_custom_call.1} parent=1 // pred_fallthru
      _
    // Predicated region
    $region54: #{tpu_custom_call.1} parent=1 // pred_check
      _
    $region55: #{tpu_custom_call.1} parent=1 // pred_check_branch
      %393 = sbr.rel (0) target = $region57
    $region56: #{tpu_custom_call.1} parent=1 // pred_region
      %394 = dma.done [#allocation7], 16
    $region57: #{tpu_custom_call.1} parent=1 // pred_fallthru
      _
    // Predicated region
    $region58: #{tpu_custom_call.1} parent=1 // pred_check
      _
    $region59: #{tpu_custom_call.1} parent=1 // pred_check_branch
      %396 = sbr.rel (0) target = $region61
    $region60: #{tpu_custom_call.1} parent=1 // pred_region
      %397 = dma.done [#allocation13], 16
    $region61: #{tpu_custom_call.1} parent=1 // pred_fallthru
      _
    %398 = vsyncpa [#allocation6], 1
    %399 = vsyncpa [#allocation9], 1
    %400 = vsyncpa [#allocation7], 1
    %401 = vsyncpa [#allocation13], 1

</llo_original>
